<compile_context>
chip_gen: v7x
topology: tpu7x:2x2x1
jax: 0.10.0
libtpu: 0.0.40
codegen_flags: <defaults>
</compile_context>

<pallas_src>
import functools

import jax
import jax.numpy as jnp
from jax.experimental import pallas as pl
from jax.experimental.pallas import tpu as pltpu

D_IN = 4
D_IN_AUG = 8   # 4 features + 1 constant "bias" row, padded to 8 sublanes
H1 = 128
H2 = 365
H2P = 384      # 365 zero-padded to 3 * 128 lanes
D_OUT = 1


def _round_up(n, m):
    return ((n + m - 1) // m) * m


def simple_mlp_kernel(xt_ref, w1_ref, w2_ref, b2_ref, w3_ref, b3_ref, o_ref):
    # x^T tile: (8, TB) f32; row 4 is the constant 1.0 (folded layer-1 bias).
    xt = xt_ref[...]

    # Layer 1 (+ bias via augmented column): (128, 8) @ (8, TB) -> tanh.
    h1 = jnp.tanh(jnp.dot(w1_ref[...], xt,
                          preferred_element_type=jnp.float32))   # (128, TB)

    # Layer 2, sigmoid affine folded into weights:
    #   sigmoid(w2^T h1 + b2) = 0.5 * tanh(w2'·h1 + b2') + 0.5,
    # the 0.5*... + 0.5 part is absorbed into w3'/b3' wrapper-side, so the
    # kernel only needs the tanh.
    t = jnp.tanh(jnp.dot(w2_ref[...], h1,
                         preferred_element_type=jnp.float32)
                 + b2_ref[...])                                   # (384, TB)

    # Layer 3: (1, 384) @ (384, TB) + folded scalar bias -> lane-dense store.
    z3 = jnp.dot(w3_ref[...], t, preferred_element_type=jnp.float32)
    o_ref[...] = (z3 + b3_ref[0, 0]).astype(o_ref.dtype)


@functools.partial(jax.jit, static_argnames=("tile_b",))
def simple_forward(x, params, *, tile_b=2048):
    """x: (B, 4) f32. params in natural (in, out) layout, f32."""
    assert tile_b % 128 == 0
    w1, b1, w2, b2, w3, b3 = params
    B = x.shape[0]

    # Tile choice: big tiles to amortize per-grid-step overhead, but keep at
    # least 2 grid steps whenever B > 128 so the "parallel" batch axis spans
    # both TensorCores on v7x.
    B128 = _round_up(max(B, 1), 128)
    TB = min(tile_b, max(128, _round_up(pl.cdiv(B128, 2), 128)))
    Bp = _round_up(max(B, 1), TB)
    grid = (Bp // TB,)

    f32 = jnp.float32

    # x^T augmented with the constant bias row: (8, Bp), row 4 == 1.0.
    xt = jnp.zeros((D_IN_AUG, Bp), f32)
    xt = xt.at[:D_IN, :B].set(x.T.astype(f32))
    xt = xt.at[D_IN, :].set(1.0)

    # w1^T augmented with b1 as column 4: (128, 8).
    w1t = jnp.zeros((H1, D_IN_AUG), f32)
    w1t = w1t.at[:, :D_IN].set(w1.T.astype(f32))
    w1t = w1t.at[:, D_IN].set(b1.reshape(H1).astype(f32))

    # Sigmoid-affine fold (exact identity sigmoid(z) = 0.5*tanh(0.5*z) + 0.5):
    #   w2' = 0.5*w2^T, b2' = 0.5*b2 (padded rows stay 0 -> tanh(0) = 0),
    #   w3' = 0.5*w3^T (padded cols stay 0),
    #   b3' = b3 + 0.5 * sum over the 365 real rows of w3.
    w2t = jnp.zeros((H2P, H1), f32).at[:H2, :].set(0.5 * w2.T.astype(f32))
    b2col = jnp.zeros((H2P, 1), f32).at[:H2, :].set(
        0.5 * b2.reshape(H2, 1).astype(f32))
    b2rep = jnp.broadcast_to(b2col, (H2P, TB))            # lane-replicated
    w3t = jnp.zeros((D_OUT, H2P), f32).at[:, :H2].set(0.5 * w3.T.astype(f32))
    b3s = (b3.reshape(1, 1).astype(f32)
           + 0.5 * jnp.sum(w3.astype(f32)))               # (1, 1) scalar

    out = pl.pallas_call(
        simple_mlp_kernel,
        out_shape=jax.ShapeDtypeStruct((1, Bp), jnp.float32),
        grid=grid,
        in_specs=[
            pl.BlockSpec((D_IN_AUG, TB), lambda i: (0, i)),   # x^T (+bias row), batch-tiled
            pl.BlockSpec((H1, D_IN_AUG), lambda i: (0, 0)),   # w1^T|b1 (VMEM-resident)
            pl.BlockSpec((H2P, H1), lambda i: (0, 0)),        # w2' = 0.5*w2^T
            pl.BlockSpec((H2P, TB), lambda i: (0, 0)),        # b2' lane-replicated
            pl.BlockSpec((D_OUT, H2P), lambda i: (0, 0)),     # w3' = 0.5*w3^T
            pl.BlockSpec((1, 1), lambda i: (0, 0),
                         memory_space=pltpu.MemorySpace.SMEM),  # b3' scalar
        ],
        out_specs=pl.BlockSpec((1, TB), lambda i: (0, i)),    # lane-dense output
        compiler_params=pltpu.CompilerParams(
            dimension_semantics=("parallel",)),
    )(xt, w1t, w2t, b2rep, w3t, b3s)

    return out[0, :B].reshape(B, 1)


def init_params(key):
    # Shapes follow Simple.__init__: Linear(4,128), Linear(128,365), Linear(365,1).
    k1, k2, k3, k4, k5, k6 = jax.random.split(key, 6)

    def linear(kw, kb, fan_in, fan_out):
        bound = 1.0 / jnp.sqrt(jnp.float32(fan_in))
        w = jax.random.uniform(kw, (fan_in, fan_out), jnp.float32, -bound, bound)
        b = jax.random.uniform(kb, (1, fan_out), jnp.float32, -bound, bound)
        return w, b

    w1, b1 = linear(k1, k2, D_IN, H1)
    w2, b2 = linear(k3, k4, H1, H2)
    w3, b3 = linear(k5, k6, H2, D_OUT)
    return (w1, b1, w2, b2, w3, b3)


def reference_forward(x, params):
    w1, b1, w2, b2, w3, b3 = params
    h1 = jnp.tanh(x @ w1 + b1)
    h2 = jax.nn.sigmoid(h1 @ w2 + b2)
    return h2 @ w3 + b3


if __name__ == "__main__":
    key = jax.random.PRNGKey(0)
    kx, kp = jax.random.split(key)
    params = init_params(kp)

    # Primary small case (matches module input layout (B, 4)).
    B = 8
    x = jax.random.normal(kx, (B, D_IN), jnp.float32)
    out = jax.block_until_ready(simple_forward(x, params))
    ref = reference_forward(x, params)
    assert out.shape == (B, 1)
    assert jnp.allclose(out, ref, atol=1e-4, rtol=1e-4), (
        f"max abs err {jnp.max(jnp.abs(out - ref))}")

    # Multi-tile case: exercises the batch grid, tail padding, resident weights.
    B2 = 300
    x2 = jax.random.normal(jax.random.PRNGKey(1), (B2, D_IN), jnp.float32)
    out2 = jax.block_until_ready(simple_forward(x2, params, tile_b=128))
    ref2 = reference_forward(x2, params)
    assert out2.shape == (B2, 1)
    assert jnp.allclose(out2, ref2, atol=1e-4, rtol=1e-4), (
        f"max abs err {jnp.max(jnp.abs(out2 - ref2))}")

    # Default large-tile path on the same data (TB chosen for >=2 grid steps).
    out3 = jax.block_until_ready(simple_forward(x2, params))
    assert jnp.allclose(out3, ref2, atol=1e-4, rtol=1e-4)

    print("KERNEL_OK")
</pallas_src>

<mosaic_0001>
module attributes {stable_mosaic.version = 11 : i64} {
  func.func @simple_mlp_kernel(%arg0: i32, %arg1: memref<8x128xf32, #tpu.memory_space<vmem>>, %arg2: memref<128x8xf32, #tpu.memory_space<vmem>>, %arg3: memref<384x128xf32, #tpu.memory_space<vmem>>, %arg4: memref<384x128xf32, #tpu.memory_space<vmem>>, %arg5: memref<1x384xf32, #tpu.memory_space<vmem>>, %arg6: memref<1x1xf32, #tpu.memory_space<smem>>, %arg7: memref<1x128xf32, #tpu.memory_space<vmem>>) attributes {dimension_semantics = [#tpu.dimension_semantics<parallel>], iteration_bounds = array<i64: 1>, scalar_prefetch = 0 : i64, scratch_operands = 0 : i64, tpu.core_type = #tpu.core_type<tc>, window_params = [{transform_indices = @transform_0, window_bounds = array<i64: 8, 128>}, {pipeline_mode = #tpu.pipeline_mode<synchronous>, transform_indices = @transform_1, window_bounds = array<i64: 128, 8>}, {pipeline_mode = #tpu.pipeline_mode<synchronous>, transform_indices = @transform_2, window_bounds = array<i64: 384, 128>}, {pipeline_mode = #tpu.pipeline_mode<synchronous>, transform_indices = @transform_3, window_bounds = array<i64: 384, 128>}, {pipeline_mode = #tpu.pipeline_mode<synchronous>, transform_indices = @transform_4, window_bounds = array<i64: 1, 384>}, {transform_indices = @transform_5, window_bounds = array<i64: 1, 1>}, {transform_indices = @transform_6, window_bounds = array<i64: 1, 128>}]} {
    %c0 = arith.constant 0 : index
    %c0_0 = arith.constant 0 : index
    %0 = vector.load %arg1[%c0, %c0_0] : memref<8x128xf32, #tpu.memory_space<vmem>>, vector<8x128xf32>
    %c0_1 = arith.constant 0 : index
    %c0_2 = arith.constant 0 : index
    %1 = vector.load %arg2[%c0_1, %c0_2] : memref<128x8xf32, #tpu.memory_space<vmem>>, vector<128x8xf32>
    %cst = arith.constant dense<0.000000e+00> : vector<128x128xf32>
    %2 = tpu.matmul %1, %0, %cst {dimension_numbers = #tpu.dot_dimension_numbers<[1], [0], [0], [1], [0, 0, 1, 1], [], []>} : vector<128x8xf32>, vector<8x128xf32>, vector<128x128xf32> -> vector<128x128xf32>
    %3 = math.tanh %2 : vector<128x128xf32>
    %c0_3 = arith.constant 0 : index
    %c0_4 = arith.constant 0 : index
    %4 = vector.load %arg3[%c0_3, %c0_4] : memref<384x128xf32, #tpu.memory_space<vmem>>, vector<384x128xf32>
    %cst_5 = arith.constant dense<0.000000e+00> : vector<384x128xf32>
    %5 = tpu.matmul %4, %3, %cst_5 {dimension_numbers = #tpu.dot_dimension_numbers<[1], [0], [0], [1], [0, 0, 1, 1], [], []>} : vector<384x128xf32>, vector<128x128xf32>, vector<384x128xf32> -> vector<384x128xf32>
    %c0_6 = arith.constant 0 : index
    %c0_7 = arith.constant 0 : index
    %6 = vector.load %arg4[%c0_6, %c0_7] : memref<384x128xf32, #tpu.memory_space<vmem>>, vector<384x128xf32>
    %7 = arith.addf %5, %6 : vector<384x128xf32>
    %8 = math.tanh %7 : vector<384x128xf32>
    %c0_8 = arith.constant 0 : index
    %c0_9 = arith.constant 0 : index
    %9 = vector.load %arg5[%c0_8, %c0_9] : memref<1x384xf32, #tpu.memory_space<vmem>>, vector<1x384xf32>
    %cst_10 = arith.constant dense<0.000000e+00> : vector<1x128xf32>
    %10 = tpu.matmul %9, %8, %cst_10 {dimension_numbers = #tpu.dot_dimension_numbers<[1], [0], [0], [1], [0, 0, 1, 1], [], []>} : vector<1x384xf32>, vector<384x128xf32>, vector<1x128xf32> -> vector<1x128xf32>
    %c0_11 = arith.constant 0 : index
    %c0_12 = arith.constant 0 : index
    %11 = memref.load %arg6[%c0_11, %c0_12] : memref<1x1xf32, #tpu.memory_space<smem>>
    %12 = vector.broadcast %11 : f32 to vector<1x128xf32>
    %13 = arith.addf %10, %12 : vector<1x128xf32>
    %c0_13 = arith.constant 0 : index
    %c0_14 = arith.constant 0 : index
    %14 = vector.load %arg7[%c0_13, %c0_14] : memref<1x128xf32, #tpu.memory_space<vmem>>, vector<1x128xf32>
    tpu.vector_store %arg7[%c0_13, %c0_14], %13 {strides = array<i32>} : memref<1x128xf32, #tpu.memory_space<vmem>>, vector<1x128xf32>,
    return
  }
  func.func @transform_0(%arg0: i32) -> (i32, i32) {
    %c0_i32 = arith.constant 0 : i32
    %c0_i32_0 = arith.constant 0 : i32
    return %c0_i32, %arg0 : i32, i32
  }
  func.func @transform_1(%arg0: i32) -> (i32, i32) {
    %c0_i32 = arith.constant 0 : i32
    %c0_i32_0 = arith.constant 0 : i32
    %c0_i32_1 = arith.constant 0 : i32
    return %c0_i32, %c0_i32_0 : i32, i32
  }
  func.func @transform_2(%arg0: i32) -> (i32, i32) {
    %c0_i32 = arith.constant 0 : i32
    %c0_i32_0 = arith.constant 0 : i32
    %c0_i32_1 = arith.constant 0 : i32
    return %c0_i32, %c0_i32_0 : i32, i32
  }
  func.func @transform_3(%arg0: i32) -> (i32, i32) {
    %c0_i32 = arith.constant 0 : i32
    %c0_i32_0 = arith.constant 0 : i32
    %c0_i32_1 = arith.constant 0 : i32
    return %c0_i32, %c0_i32_0 : i32, i32
  }
  func.func @transform_4(%arg0: i32) -> (i32, i32) {
    %c0_i32 = arith.constant 0 : i32
    %c0_i32_0 = arith.constant 0 : i32
    %c0_i32_1 = arith.constant 0 : i32
    return %c0_i32, %c0_i32_0 : i32, i32
  }
  func.func @transform_5(%arg0: i32) -> (i32, i32) {
    %c0_i32 = arith.constant 0 : i32
    %c0_i32_0 = arith.constant 0 : i32
    %c0_i32_1 = arith.constant 0 : i32
    return %c0_i32, %c0_i32_0 : i32, i32
  }
  func.func @transform_6(%arg0: i32) -> (i32, i32) {
    %c0_i32 = arith.constant 0 : i32
    %c0_i32_0 = arith.constant 0 : i32
    return %c0_i32, %arg0 : i32, i32
  }
}

</mosaic_0001>

<llo_original>
// kernel: simple_forward.1
$region0: #{simple_forward.1}
  #allocation0 [shape = 'u32[]', space=smem, size = 0x4, offset = 0x4, fixed_abs, tag = 'smem constant byte address 0x4 - core index']
  #allocation1 [shape = 'u32[144,128]{1,0:T(1,128)}', space=vmem, size = 0x12000, scoped, tag = 'internal scratch']
  #allocation2 [shape = 'f32[1,1]{1,0:T(1,128)S(6)}', space=smem, size = 0x200, scoped, tag = 'scoped memory for simple_forward.1']
  %s0 = inlined_call_operand.vmem [shape: f32[8,128], index: 0, kind: input, shape index: {}]
  %s1 = inlined_call_operand.vmem [shape: f32[128,8], index: 1, kind: input, shape index: {}]
  %s2 = inlined_call_operand.vmem [shape: f32[384,128], index: 2, kind: input, shape index: {}]
  %s3 = inlined_call_operand.vmem [shape: f32[384,128], index: 3, kind: input, shape index: {}]
  %s4 = inlined_call_operand.vmem [shape: f32[1,384], index: 4, kind: input, shape index: {}]
  %s5 = inlined_call_operand.<no memory space> [shape: f32[1,1], index: 5, kind: input, shape index: {}]
  %s6 = inlined_call_operand.vmem [shape: f32[1,128], index: 6, kind: output, shape index: {}]
  %s7 = sld [smem:[#allocation0]]
  $region34: #{simple_forward.1} parent=0
    _
  %s9 = ssub.s32 1, %s7
  %s10 = scalar_select 0, %s9, %s7
  %11 = sst [smem:[#allocation2]] %s5
  // Predicated region
  $region2: #{simple_forward.1} parent=0 // pred_check
    _
  $region3: #{simple_forward.1} parent=0 // pred_check_branch
    %13 = sbr.rel (0) target = $region5
  $region4: #{simple_forward.1} parent=0 // pred_region
    _
  $region5: #{simple_forward.1} parent=0 // pred_fallthru
    _
  // Predicated region
  $region6: #{simple_forward.1} parent=0 // pred_check
    _
  $region7: #{simple_forward.1} parent=0 // pred_check_branch
    %15 = sbr.rel (0) target = $region9
  $region8: #{simple_forward.1} parent=0 // pred_region
    _
  $region9: #{simple_forward.1} parent=0 // pred_fallthru
    _
  // Predicated region
  $region10: #{simple_forward.1} parent=0 // pred_check
    _
  $region11: #{simple_forward.1} parent=0 // pred_check_branch
    %17 = sbr.rel (0) target = $region13
  $region12: #{simple_forward.1} parent=0 // pred_region
    _
  $region13: #{simple_forward.1} parent=0 // pred_fallthru
    _
  // Predicated region
  $region14: #{simple_forward.1} parent=0 // pred_check
    _
  $region15: #{simple_forward.1} parent=0 // pred_check_branch
    %19 = sbr.rel (0) target = $region17
  $region16: #{simple_forward.1} parent=0 // pred_region
    _
  $region17: #{simple_forward.1} parent=0 // pred_fallthru
    _
  // Predicated region
  $region18: #{simple_forward.1} parent=0 // pred_check
    _
  $region19: #{simple_forward.1} parent=0 // pred_check_branch
    %21 = sbr.rel (0) target = $region21
  $region20: #{simple_forward.1} parent=0 // pred_region
    _
  $region21: #{simple_forward.1} parent=0 // pred_fallthru
    _
  // Predicated region
  $region22: #{simple_forward.1} parent=0 // pred_check
    _
  $region23: #{simple_forward.1} parent=0 // pred_check_branch
    %23 = sbr.rel (0) target = $region25
  $region24: #{simple_forward.1} parent=0 // pred_region
    _
  $region25: #{simple_forward.1} parent=0 // pred_fallthru
    _
  %v24 = vld [vmem:[%s0] sm:$0xff]
  %v25 = vld [vmem:[%s1] sm:$0xff]
  %v26 = vld [vmem:[%s1 + $0x8] sm:$0xff]
  %v27 = vld [vmem:[%s1 + $0x10] sm:$0xff]
  %v28 = vld [vmem:[%s1 + $0x18] sm:$0xff]
  %v29 = vld [vmem:[%s1 + $0x20] sm:$0xff]
  %v30 = vld [vmem:[%s1 + $0x28] sm:$0xff]
  %v31 = vld [vmem:[%s1 + $0x30] sm:$0xff]
  %v32 = vld [vmem:[%s1 + $0x38] sm:$0xff]
  %v33 = vld [vmem:[%s1 + $0x40] sm:$0xff]
  %v34 = vld [vmem:[%s1 + $0x48] sm:$0xff]
  %v35 = vld [vmem:[%s1 + $0x50] sm:$0xff]
  %v36 = vld [vmem:[%s1 + $0x58] sm:$0xff]
  %v37 = vld [vmem:[%s1 + $0x60] sm:$0xff]
  %v38 = vld [vmem:[%s1 + $0x68] sm:$0xff]
  %v39 = vld [vmem:[%s1 + $0x70] sm:$0xff]
  %v40 = vld [vmem:[%s1 + $0x78] sm:$0xff]
  %vm41 = vcmask 64512
  %v43 = vsel %vm41, %v25, 0
  %v46 = vsel %vm41, %v26, 0
  %v49 = vsel %vm41, %v27, 0
  %v52 = vsel %vm41, %v28, 0
  %v55 = vsel %vm41, %v29, 0
  %v58 = vsel %vm41, %v30, 0
  %v61 = vsel %vm41, %v31, 0
  %v64 = vsel %vm41, %v32, 0
  %v67 = vsel %vm41, %v33, 0
  %v70 = vsel %vm41, %v34, 0
  %v73 = vsel %vm41, %v35, 0
  %v76 = vsel %vm41, %v36, 0
  %v79 = vsel %vm41, %v37, 0
  %v82 = vsel %vm41, %v38, 0
  %v85 = vsel %vm41, %v39, 0
  %v88 = vsel %vm41, %v40, 0
  %90 = vmatprep.subr.mxu0 0.0
  %91 = vmatpush1.msra.mxu0 %v24
  %92 = vmatprep.subr.mxu0 0.0
  %93 = vmatpush1.msra.mxu0 0.0
  %94 = vmatprep.subr.mxu0 0.0
  %95 = vmatpush1.msra.mxu0 0.0
  %96 = vmatprep.subr.mxu0 0.0
  %97 = vmatpush1.msra.mxu0 0.0
  %98 = vmatprep.subr.mxu0 0.0
  %99 = vmatpush1.msra.mxu0 0.0
  %100 = vmatprep.subr.mxu0 0.0
  %101 = vmatpush1.msra.mxu0 0.0
  %102 = vmatprep.subr.mxu0 0.0
  %103 = vmatpush1.msra.mxu0 0.0
  %104 = vmatprep.subr.mxu0 0.0
  %105 = vmatpush1.msra.mxu0 0.0
  %106 = vmatprep.subr.mxu0 0.0
  %107 = vmatpush1.msra.mxu0 0.0
  %108 = vmatprep.subr.mxu0 0.0
  %109 = vmatpush1.msra.mxu0 0.0
  %110 = vmatprep.subr.mxu0 0.0
  %111 = vmatpush1.msra.mxu0 0.0
  %112 = vmatprep.subr.mxu0 0.0
  %113 = vmatpush1.msra.mxu0 0.0
  %114 = vmatprep.subr.mxu0 0.0
  %115 = vmatpush1.msra.mxu0 0.0
  %116 = vmatprep.subr.mxu0 0.0
  %117 = vmatpush1.msra.mxu0 0.0
  %118 = vmatprep.subr.mxu0 0.0
  %119 = vmatpush1.msra.mxu0 0.0
  %120 = vmatprep.subr.mxu0 0.0
  %121 = vmatpush1.msra.mxu0 0.0
  %122 = vmatprep.subr.mxu0 0.0
  %123 = vmatpush1.msra.mxu0 0.0
  %124 = vmatprep.subr.mxu0 0.0
  %125 = vmatpush1.msra.mxu0 0.0
  %126 = vmatprep.subr.mxu0 0.0
  %127 = vmatpush1.msra.mxu0 0.0
  %128 = vmatprep.subr.mxu0 0.0
  %129 = vmatpush1.msra.mxu0 0.0
  %130 = vmatprep.subr.mxu0 0.0
  %131 = vmatpush1.msra.mxu0 0.0
  %132 = vmatprep.subr.mxu0 0.0
  %133 = vmatpush1.msra.mxu0 0.0
  %134 = vmatprep.subr.mxu0 0.0
  %135 = vmatpush1.msra.mxu0 0.0
  %136 = vmatprep.subr.mxu0 0.0
  %137 = vmatpush1.msra.mxu0 0.0
  %138 = vmatprep.subr.mxu0 0.0
  %139 = vmatpush1.msra.mxu0 0.0
  %140 = vmatprep.subr.mxu0 0.0
  %141 = vmatpush1.msra.mxu0 0.0
  %142 = vmatprep.subr.mxu0 0.0
  %143 = vmatpush1.msra.mxu0 0.0
  %144 = vmatprep.subr.mxu0 0.0
  %145 = vmatpush1.msra.mxu0 0.0
  %146 = vmatprep.subr.mxu0 0.0
  %147 = vmatpush1.msra.mxu0 0.0
  %148 = vmatprep.subr.mxu0 0.0
  %149 = vmatpush1.msra.mxu0 0.0
  %150 = vmatprep.subr.mxu0 0.0
  %151 = vmatpush1.msra.mxu0 0.0
  %152 = vmatprep.subr.mxu0 0.0
  %153 = vmatpush1.msra.mxu0 0.0
  %154 = vmatprep.mubr.f32.mxu0 0.0
  %155 = vmatmul.mubr.f32.gmra.mrb[0].mxu0 %v43
  %v156 = vpop.f32.mrb[0].mxu0
  %v157 = vadd.f32 0.0, %v156
  %v158 = vpop.f32.mrb[0].mxu0
  %159 = vmatprep.mubr.f32.mxu0 0.0
  %160 = vmatmul.mubr.f32.gmra.mrb[0].mxu0 %v46
  %v161 = vpop.f32.mrb[0].mxu0
  %v162 = vadd.f32 0.0, %v161
  %v163 = vpop.f32.mrb[0].mxu0
  %164 = vmatprep.mubr.f32.mxu0 0.0
  %165 = vmatmul.mubr.f32.gmra.mrb[0].mxu0 %v49
  %v166 = vpop.f32.mrb[0].mxu0
  %v167 = vadd.f32 0.0, %v166
  %v168 = vpop.f32.mrb[0].mxu0
  %169 = vmatprep.mubr.f32.mxu0 0.0
  %170 = vmatmul.mubr.f32.gmra.mrb[0].mxu0 %v52
  %v171 = vpop.f32.mrb[0].mxu0
  %v172 = vadd.f32 0.0, %v171
  %v173 = vpop.f32.mrb[0].mxu0
  %174 = vmatprep.mubr.f32.mxu0 0.0
  %175 = vmatmul.mubr.f32.gmra.mrb[0].mxu0 %v55
  %v176 = vpop.f32.mrb[0].mxu0
  %v177 = vadd.f32 0.0, %v176
  %v178 = vpop.f32.mrb[0].mxu0
  %179 = vmatprep.mubr.f32.mxu0 0.0
  %180 = vmatmul.mubr.f32.gmra.mrb[0].mxu0 %v58
  %v181 = vpop.f32.mrb[0].mxu0
  %v182 = vadd.f32 0.0, %v181
  %v183 = vpop.f32.mrb[0].mxu0
  %184 = vmatprep.mubr.f32.mxu0 0.0
  %185 = vmatmul.mubr.f32.gmra.mrb[0].mxu0 %v61
  %v186 = vpop.f32.mrb[0].mxu0
  %v187 = vadd.f32 0.0, %v186
  %v188 = vpop.f32.mrb[0].mxu0
  %189 = vmatprep.mubr.f32.mxu0 0.0
  %190 = vmatmul.mubr.f32.gmra.mrb[0].mxu0 %v64
  %v191 = vpop.f32.mrb[0].mxu0
  %v192 = vadd.f32 0.0, %v191
  %v193 = vpop.f32.mrb[0].mxu0
  %194 = vmatprep.mubr.f32.mxu0 0.0
  %195 = vmatmul.mubr.f32.gmra.mrb[0].mxu0 %v67
  %v196 = vpop.f32.mrb[0].mxu0
  %v197 = vadd.f32 0.0, %v196
  %v198 = vpop.f32.mrb[0].mxu0
  %199 = vmatprep.mubr.f32.mxu0 0.0
  %200 = vmatmul.mubr.f32.gmra.mrb[0].mxu0 %v70
  %v201 = vpop.f32.mrb[0].mxu0
  %v202 = vadd.f32 0.0, %v201
  %v203 = vpop.f32.mrb[0].mxu0
  %204 = vmatprep.mubr.f32.mxu0 0.0
  %205 = vmatmul.mubr.f32.gmra.mrb[0].mxu0 %v73
  %v206 = vpop.f32.mrb[0].mxu0
  %v207 = vadd.f32 0.0, %v206
  %v208 = vpop.f32.mrb[0].mxu0
  %209 = vmatprep.mubr.f32.mxu0 0.0
  %210 = vmatmul.mubr.f32.gmra.mrb[0].mxu0 %v76
  %v211 = vpop.f32.mrb[0].mxu0
  %v212 = vadd.f32 0.0, %v211
  %v213 = vpop.f32.mrb[0].mxu0
  %214 = vmatprep.mubr.f32.mxu0 0.0
  %215 = vmatmul.mubr.f32.gmra.mrb[0].mxu0 %v79
  %v216 = vpop.f32.mrb[0].mxu0
  %v217 = vadd.f32 0.0, %v216
  %v218 = vpop.f32.mrb[0].mxu0
  %219 = vmatprep.mubr.f32.mxu0 0.0
  %220 = vmatmul.mubr.f32.gmra.mrb[0].mxu0 %v82
  %v221 = vpop.f32.mrb[0].mxu0
  %v222 = vadd.f32 0.0, %v221
  %v223 = vpop.f32.mrb[0].mxu0
  %224 = vmatprep.mubr.f32.mxu0 0.0
  %225 = vmatmul.mubr.f32.gmra.mrb[0].mxu0 %v85
  %v226 = vpop.f32.mrb[0].mxu0
  %v227 = vadd.f32 0.0, %v226
  %v228 = vpop.f32.mrb[0].mxu0
  %229 = vmatprep.mubr.f32.mxu0 0.0
  %230 = vmatmul.mubr.f32.gmra.mrb[0].mxu0 %v88
  %v231 = vpop.f32.mrb[0].mxu0
  %v232 = vadd.f32 0.0, %v231
  %v233 = vpop.f32.mrb[0].mxu0
  %234 = vdwg.mxu0
  %v235 = vtanh.pop %v157
  %v236 = vtanh.pop %v162
  %v237 = vtanh.pop %v167
  %v238 = vtanh.pop %v172
  %v239 = vtanh.pop %v177
  %v240 = vtanh.pop %v182
  %v241 = vtanh.pop %v187
  %v242 = vtanh.pop %v192
  %v243 = vtanh.pop %v197
  %v244 = vtanh.pop %v202
  %v245 = vtanh.pop %v207
  %v246 = vtanh.pop %v212
  %v247 = vtanh.pop %v217
  %v248 = vtanh.pop %v222
  %v249 = vtanh.pop %v227
  %v250 = vtanh.pop %v232
  %v251 = vld [vmem:[%s2] sm:$0xff]
  %v252 = vld [vmem:[%s2 + $0x8] sm:$0xff]
  %v253 = vld [vmem:[%s2 + $0x10] sm:$0xff]
  %v254 = vld [vmem:[%s2 + $0x18] sm:$0xff]
  %v255 = vld [vmem:[%s2 + $0x20] sm:$0xff]
  %v256 = vld [vmem:[%s2 + $0x28] sm:$0xff]
  %v257 = vld [vmem:[%s2 + $0x30] sm:$0xff]
  %v258 = vld [vmem:[%s2 + $0x38] sm:$0xff]
  %v259 = vld [vmem:[%s2 + $0x40] sm:$0xff]
  %v260 = vld [vmem:[%s2 + $0x48] sm:$0xff]
  %v261 = vld [vmem:[%s2 + $0x50] sm:$0xff]
  %v262 = vld [vmem:[%s2 + $0x58] sm:$0xff]
  %v263 = vld [vmem:[%s2 + $0x60] sm:$0xff]
  %v264 = vld [vmem:[%s2 + $0x68] sm:$0xff]
  %v265 = vld [vmem:[%s2 + $0x70] sm:$0xff]
  %v266 = vld [vmem:[%s2 + $0x78] sm:$0xff]
  %v267 = vld [vmem:[%s2 + $0x80] sm:$0xff]
  %v268 = vld [vmem:[%s2 + $0x88] sm:$0xff]
  %v269 = vld [vmem:[%s2 + $0x90] sm:$0xff]
  %v270 = vld [vmem:[%s2 + $0x98] sm:$0xff]
  %v271 = vld [vmem:[%s2 + $0xa0] sm:$0xff]
  %v272 = vld [vmem:[%s2 + $0xa8] sm:$0xff]
  %v273 = vld [vmem:[%s2 + $0xb0] sm:$0xff]
  %v274 = vld [vmem:[%s2 + $0xb8] sm:$0xff]
  %v275 = vld [vmem:[%s2 + $0xc0] sm:$0xff]
  %v276 = vld [vmem:[%s2 + $0xc8] sm:$0xff]
  %v277 = vld [vmem:[%s2 + $0xd0] sm:$0xff]
  %v278 = vld [vmem:[%s2 + $0xd8] sm:$0xff]
  %v279 = vld [vmem:[%s2 + $0xe0] sm:$0xff]
  %v280 = vld [vmem:[%s2 + $0xe8] sm:$0xff]
  %v281 = vld [vmem:[%s2 + $0xf0] sm:$0xff]
  %v282 = vld [vmem:[%s2 + $0xf8] sm:$0xff]
  %v283 = vld [vmem:[%s2 + $0x100] sm:$0xff]
  %v284 = vld [vmem:[%s2 + $0x108] sm:$0xff]
  %v285 = vld [vmem:[%s2 + $0x110] sm:$0xff]
  %v286 = vld [vmem:[%s2 + $0x118] sm:$0xff]
  %v287 = vld [vmem:[%s2 + $0x120] sm:$0xff]
  %v288 = vld [vmem:[%s2 + $0x128] sm:$0xff]
  %v289 = vld [vmem:[%s2 + $0x130] sm:$0xff]
  %v290 = vld [vmem:[%s2 + $0x138] sm:$0xff]
  %v291 = vld [vmem:[%s2 + $0x140] sm:$0xff]
  %v292 = vld [vmem:[%s2 + $0x148] sm:$0xff]
  %v293 = vld [vmem:[%s2 + $0x150] sm:$0xff]
  %v294 = vld [vmem:[%s2 + $0x158] sm:$0xff]
  %v295 = vld [vmem:[%s2 + $0x160] sm:$0xff]
  %v296 = vld [vmem:[%s2 + $0x168] sm:$0xff]
  %v297 = vld [vmem:[%s2 + $0x170] sm:$0xff]
  %v298 = vld [vmem:[%s2 + $0x178] sm:$0xff]
  %v299 = vld [vmem:[%s3] sm:$0xff]
  %v300 = vld [vmem:[%s3 + $0x8] sm:$0xff]
  %v301 = vld [vmem:[%s3 + $0x10] sm:$0xff]
  %v302 = vld [vmem:[%s3 + $0x18] sm:$0xff]
  %v303 = vld [vmem:[%s3 + $0x20] sm:$0xff]
  %v304 = vld [vmem:[%s3 + $0x28] sm:$0xff]
  %v305 = vld [vmem:[%s3 + $0x30] sm:$0xff]
  %v306 = vld [vmem:[%s3 + $0x38] sm:$0xff]
  %v307 = vld [vmem:[%s3 + $0x40] sm:$0xff]
  %v308 = vld [vmem:[%s3 + $0x48] sm:$0xff]
  %v309 = vld [vmem:[%s3 + $0x50] sm:$0xff]
  %v310 = vld [vmem:[%s3 + $0x58] sm:$0xff]
  %v311 = vld [vmem:[%s3 + $0x60] sm:$0xff]
  %v312 = vld [vmem:[%s3 + $0x68] sm:$0xff]
  %v313 = vld [vmem:[%s3 + $0x70] sm:$0xff]
  %v314 = vld [vmem:[%s3 + $0x78] sm:$0xff]
  %v315 = vld [vmem:[%s3 + $0x80] sm:$0xff]
  %v316 = vld [vmem:[%s3 + $0x88] sm:$0xff]
  %v317 = vld [vmem:[%s3 + $0x90] sm:$0xff]
  %v318 = vld [vmem:[%s3 + $0x98] sm:$0xff]
  %v319 = vld [vmem:[%s3 + $0xa0] sm:$0xff]
  %v320 = vld [vmem:[%s3 + $0xa8] sm:$0xff]
  %v321 = vld [vmem:[%s3 + $0xb0] sm:$0xff]
  %v322 = vld [vmem:[%s3 + $0xb8] sm:$0xff]
  %v323 = vld [vmem:[%s3 + $0xc0] sm:$0xff]
  %v324 = vld [vmem:[%s3 + $0xc8] sm:$0xff]
  %v325 = vld [vmem:[%s3 + $0xd0] sm:$0xff]
  %v326 = vld [vmem:[%s3 + $0xd8] sm:$0xff]
  %v327 = vld [vmem:[%s3 + $0xe0] sm:$0xff]
  %v328 = vld [vmem:[%s3 + $0xe8] sm:$0xff]
  %v329 = vld [vmem:[%s3 + $0xf0] sm:$0xff]
  %v330 = vld [vmem:[%s3 + $0xf8] sm:$0xff]
  %v331 = vld [vmem:[%s3 + $0x100] sm:$0xff]
  %v332 = vld [vmem:[%s3 + $0x108] sm:$0xff]
  %v333 = vld [vmem:[%s3 + $0x110] sm:$0xff]
  %v334 = vld [vmem:[%s3 + $0x118] sm:$0xff]
  %v335 = vld [vmem:[%s3 + $0x120] sm:$0xff]
  %v336 = vld [vmem:[%s3 + $0x128] sm:$0xff]
  %v337 = vld [vmem:[%s3 + $0x130] sm:$0xff]
  %v338 = vld [vmem:[%s3 + $0x138] sm:$0xff]
  %v339 = vld [vmem:[%s3 + $0x140] sm:$0xff]
  %v340 = vld [vmem:[%s3 + $0x148] sm:$0xff]
  %v341 = vld [vmem:[%s3 + $0x150] sm:$0xff]
  %v342 = vld [vmem:[%s3 + $0x158] sm:$0xff]
  %v343 = vld [vmem:[%s3 + $0x160] sm:$0xff]
  %v344 = vld [vmem:[%s3 + $0x168] sm:$0xff]
  %v345 = vld [vmem:[%s3 + $0x170] sm:$0xff]
  %v346 = vld [vmem:[%s3 + $0x178] sm:$0xff]
  %347 = vmatprep.subr.mxu0 0.0
  %348 = vmatpush1.msra.mxu0 %v235
  %349 = vmatprep.subr.mxu0 0.0
  %350 = vmatpush1.msra.mxu0 %v236
  %351 = vmatprep.subr.mxu0 0.0
  %352 = vmatpush1.msra.mxu0 %v237
  %353 = vmatprep.subr.mxu0 0.0
  %354 = vmatpush1.msra.mxu0 %v238
  %355 = vmatprep.subr.mxu0 0.0
  %356 = vmatpush1.msra.mxu0 %v239
  %357 = vmatprep.subr.mxu0 0.0
  %358 = vmatpush1.msra.mxu0 %v240
  %359 = vmatprep.subr.mxu0 0.0
  %360 = vmatpush1.msra.mxu0 %v241
  %361 = vmatprep.subr.mxu0 0.0
  %362 = vmatpush1.msra.mxu0 %v242
  %363 = vmatprep.subr.mxu0 0.0
  %364 = vmatpush1.msra.mxu0 %v243
  %365 = vmatprep.subr.mxu0 0.0
  %366 = vmatpush1.msra.mxu0 %v244
  %367 = vmatprep.subr.mxu0 0.0
  %368 = vmatpush1.msra.mxu0 %v245
  %369 = vmatprep.subr.mxu0 0.0
  %370 = vmatpush1.msra.mxu0 %v246
  %371 = vmatprep.subr.mxu0 0.0
  %372 = vmatpush1.msra.mxu0 %v247
  %373 = vmatprep.subr.mxu0 0.0
  %374 = vmatpush1.msra.mxu0 %v248
  %375 = vmatprep.subr.mxu0 0.0
  %376 = vmatpush1.msra.mxu0 %v249
  %377 = vmatprep.subr.mxu0 0.0
  %378 = vmatpush1.msra.mxu0 %v250
  %379 = vmatprep.subr.mxu0 0.0
  %380 = vmatpush1.msra.mxu0 0.0
  %381 = vmatprep.subr.mxu0 0.0
  %382 = vmatpush1.msra.mxu0 0.0
  %383 = vmatprep.subr.mxu0 0.0
  %384 = vmatpush1.msra.mxu0 0.0
  %385 = vmatprep.subr.mxu0 0.0
  %386 = vmatpush1.msra.mxu0 0.0
  %387 = vmatprep.subr.mxu0 0.0
  %388 = vmatpush1.msra.mxu0 0.0
  %389 = vmatprep.subr.mxu0 0.0
  %390 = vmatpush1.msra.mxu0 0.0
  %391 = vmatprep.subr.mxu0 0.0
  %392 = vmatpush1.msra.mxu0 0.0
  %393 = vmatprep.subr.mxu0 0.0
  %394 = vmatpush1.msra.mxu0 0.0
  %395 = vmatprep.subr.mxu0 0.0
  %396 = vmatpush1.msra.mxu0 0.0
  %397 = vmatprep.subr.mxu0 0.0
  %398 = vmatpush1.msra.mxu0 0.0
  %399 = vmatprep.subr.mxu0 0.0
  %400 = vmatpush1.msra.mxu0 0.0
  %401 = vmatprep.subr.mxu0 0.0
  %402 = vmatpush1.msra.mxu0 0.0
  %403 = vmatprep.subr.mxu0 0.0
  %404 = vmatpush1.msra.mxu0 0.0
  %405 = vmatprep.subr.mxu0 0.0
  %406 = vmatpush1.msra.mxu0 0.0
  %407 = vmatprep.subr.mxu0 0.0
  %408 = vmatpush1.msra.mxu0 0.0
  %409 = vmatprep.subr.mxu0 0.0
  %410 = vmatpush1.msra.mxu0 0.0
  %411 = vmatprep.mubr.f32.mxu0 0.0
  %412 = vmatmul.mubr.f32.gmra.mrb[0].mxu0 %v251
  %v413 = vpop.f32.mrb[0].mxu0
  %v414 = vadd.f32 %v299, %v413
  %v415 = vpop.f32.mrb[0].mxu0
  %416 = vmatprep.mubr.f32.mxu0 0.0
  %417 = vmatmul.mubr.f32.gmra.mrb[0].mxu0 %v252
  %v418 = vpop.f32.mrb[0].mxu0
  %v419 = vadd.f32 %v300, %v418
  %v420 = vpop.f32.mrb[0].mxu0
  %421 = vmatprep.mubr.f32.mxu0 0.0
  %422 = vmatmul.mubr.f32.gmra.mrb[0].mxu0 %v253
  %v423 = vpop.f32.mrb[0].mxu0
  %v424 = vadd.f32 %v301, %v423
  %v425 = vpop.f32.mrb[0].mxu0
  %426 = vmatprep.mubr.f32.mxu0 0.0
  %427 = vmatmul.mubr.f32.gmra.mrb[0].mxu0 %v254
  %v428 = vpop.f32.mrb[0].mxu0
  %v429 = vadd.f32 %v302, %v428
  %v430 = vpop.f32.mrb[0].mxu0
  %431 = vmatprep.mubr.f32.mxu0 0.0
  %432 = vmatmul.mubr.f32.gmra.mrb[0].mxu0 %v255
  %v433 = vpop.f32.mrb[0].mxu0
  %v434 = vadd.f32 %v303, %v433
  %v435 = vpop.f32.mrb[0].mxu0
  %436 = vmatprep.mubr.f32.mxu0 0.0
  %437 = vmatmul.mubr.f32.gmra.mrb[0].mxu0 %v256
  %v438 = vpop.f32.mrb[0].mxu0
  %v439 = vadd.f32 %v304, %v438
  %v440 = vpop.f32.mrb[0].mxu0
  %441 = vmatprep.mubr.f32.mxu0 0.0
  %442 = vmatmul.mubr.f32.gmra.mrb[0].mxu0 %v257
  %v443 = vpop.f32.mrb[0].mxu0
  %v444 = vadd.f32 %v305, %v443
  %v445 = vpop.f32.mrb[0].mxu0
  %446 = vmatprep.mubr.f32.mxu0 0.0
  %447 = vmatmul.mubr.f32.gmra.mrb[0].mxu0 %v258
  %v448 = vpop.f32.mrb[0].mxu0
  %v449 = vadd.f32 %v306, %v448
  %v450 = vpop.f32.mrb[0].mxu0
  %451 = vmatprep.mubr.f32.mxu0 0.0
  %452 = vmatmul.mubr.f32.gmra.mrb[0].mxu0 %v259
  %v453 = vpop.f32.mrb[0].mxu0
  %v454 = vadd.f32 %v307, %v453
  %v455 = vpop.f32.mrb[0].mxu0
  %456 = vmatprep.mubr.f32.mxu0 0.0
  %457 = vmatmul.mubr.f32.gmra.mrb[0].mxu0 %v260
  %v458 = vpop.f32.mrb[0].mxu0
  %v459 = vadd.f32 %v308, %v458
  %v460 = vpop.f32.mrb[0].mxu0
  %461 = vmatprep.mubr.f32.mxu0 0.0
  %462 = vmatmul.mubr.f32.gmra.mrb[0].mxu0 %v261
  %v463 = vpop.f32.mrb[0].mxu0
  %v464 = vadd.f32 %v309, %v463
  %v465 = vpop.f32.mrb[0].mxu0
  %466 = vmatprep.mubr.f32.mxu0 0.0
  %467 = vmatmul.mubr.f32.gmra.mrb[0].mxu0 %v262
  %v468 = vpop.f32.mrb[0].mxu0
  %v469 = vadd.f32 %v310, %v468
  %v470 = vpop.f32.mrb[0].mxu0
  %471 = vmatprep.mubr.f32.mxu0 0.0
  %472 = vmatmul.mubr.f32.gmra.mrb[0].mxu0 %v263
  %v473 = vpop.f32.mrb[0].mxu0
  %v474 = vadd.f32 %v311, %v473
  %v475 = vpop.f32.mrb[0].mxu0
  %476 = vmatprep.mubr.f32.mxu0 0.0
  %477 = vmatmul.mubr.f32.gmra.mrb[0].mxu0 %v264
  %v478 = vpop.f32.mrb[0].mxu0
  %v479 = vadd.f32 %v312, %v478
  %v480 = vpop.f32.mrb[0].mxu0
  %481 = vmatprep.mubr.f32.mxu0 0.0
  %482 = vmatmul.mubr.f32.gmra.mrb[0].mxu0 %v265
  %v483 = vpop.f32.mrb[0].mxu0
  %v484 = vadd.f32 %v313, %v483
  %v485 = vpop.f32.mrb[0].mxu0
  %486 = vmatprep.mubr.f32.mxu0 0.0
  %487 = vmatmul.mubr.f32.gmra.mrb[0].mxu0 %v266
  %v488 = vpop.f32.mrb[0].mxu0
  %v489 = vadd.f32 %v314, %v488
  %v490 = vpop.f32.mrb[0].mxu0
  %491 = vmatprep.mubr.f32.mxu0 0.0
  %492 = vmatmul.mubr.f32.gmra.mrb[0].mxu0 %v267
  %v493 = vpop.f32.mrb[0].mxu0
  %v494 = vadd.f32 %v315, %v493
  %v495 = vpop.f32.mrb[0].mxu0
  %496 = vmatprep.mubr.f32.mxu0 0.0
  %497 = vmatmul.mubr.f32.gmra.mrb[0].mxu0 %v268
  %v498 = vpop.f32.mrb[0].mxu0
  %v499 = vadd.f32 %v316, %v498
  %v500 = vpop.f32.mrb[0].mxu0
  %501 = vmatprep.mubr.f32.mxu0 0.0
  %502 = vmatmul.mubr.f32.gmra.mrb[0].mxu0 %v269
  %v503 = vpop.f32.mrb[0].mxu0
  %v504 = vadd.f32 %v317, %v503
  %v505 = vpop.f32.mrb[0].mxu0
  %506 = vmatprep.mubr.f32.mxu0 0.0
  %507 = vmatmul.mubr.f32.gmra.mrb[0].mxu0 %v270
  %v508 = vpop.f32.mrb[0].mxu0
  %v509 = vadd.f32 %v318, %v508
  %v510 = vpop.f32.mrb[0].mxu0
  %511 = vmatprep.mubr.f32.mxu0 0.0
  %512 = vmatmul.mubr.f32.gmra.mrb[0].mxu0 %v271
  %v513 = vpop.f32.mrb[0].mxu0
  %v514 = vadd.f32 %v319, %v513
  %v515 = vpop.f32.mrb[0].mxu0
  %516 = vmatprep.mubr.f32.mxu0 0.0
  %517 = vmatmul.mubr.f32.gmra.mrb[0].mxu0 %v272
  %v518 = vpop.f32.mrb[0].mxu0
  %v519 = vadd.f32 %v320, %v518
  %v520 = vpop.f32.mrb[0].mxu0
  %521 = vmatprep.mubr.f32.mxu0 0.0
  %522 = vmatmul.mubr.f32.gmra.mrb[0].mxu0 %v273
  %v523 = vpop.f32.mrb[0].mxu0
  %v524 = vadd.f32 %v321, %v523
  %v525 = vpop.f32.mrb[0].mxu0
  %526 = vmatprep.mubr.f32.mxu0 0.0
  %527 = vmatmul.mubr.f32.gmra.mrb[0].mxu0 %v274
  %v528 = vpop.f32.mrb[0].mxu0
  %v529 = vadd.f32 %v322, %v528
  %v530 = vpop.f32.mrb[0].mxu0
  %531 = vmatprep.mubr.f32.mxu0 0.0
  %532 = vmatmul.mubr.f32.gmra.mrb[0].mxu0 %v275
  %v533 = vpop.f32.mrb[0].mxu0
  %v534 = vadd.f32 %v323, %v533
  %v535 = vpop.f32.mrb[0].mxu0
  %536 = vmatprep.mubr.f32.mxu0 0.0
  %537 = vmatmul.mubr.f32.gmra.mrb[0].mxu0 %v276
  %v538 = vpop.f32.mrb[0].mxu0
  %v539 = vadd.f32 %v324, %v538
  %v540 = vpop.f32.mrb[0].mxu0
  %541 = vmatprep.mubr.f32.mxu0 0.0
  %542 = vmatmul.mubr.f32.gmra.mrb[0].mxu0 %v277
  %v543 = vpop.f32.mrb[0].mxu0
  %v544 = vadd.f32 %v325, %v543
  %v545 = vpop.f32.mrb[0].mxu0
  %546 = vmatprep.mubr.f32.mxu0 0.0
  %547 = vmatmul.mubr.f32.gmra.mrb[0].mxu0 %v278
  %v548 = vpop.f32.mrb[0].mxu0
  %v549 = vadd.f32 %v326, %v548
  %v550 = vpop.f32.mrb[0].mxu0
  %551 = vmatprep.mubr.f32.mxu0 0.0
  %552 = vmatmul.mubr.f32.gmra.mrb[0].mxu0 %v279
  %v553 = vpop.f32.mrb[0].mxu0
  %v554 = vadd.f32 %v327, %v553
  %v555 = vpop.f32.mrb[0].mxu0
  %556 = vmatprep.mubr.f32.mxu0 0.0
  %557 = vmatmul.mubr.f32.gmra.mrb[0].mxu0 %v280
  %v558 = vpop.f32.mrb[0].mxu0
  %v559 = vadd.f32 %v328, %v558
  %v560 = vpop.f32.mrb[0].mxu0
  %561 = vmatprep.mubr.f32.mxu0 0.0
  %562 = vmatmul.mubr.f32.gmra.mrb[0].mxu0 %v281
  %v563 = vpop.f32.mrb[0].mxu0
  %v564 = vadd.f32 %v329, %v563
  %v565 = vpop.f32.mrb[0].mxu0
  %566 = vmatprep.mubr.f32.mxu0 0.0
  %567 = vmatmul.mubr.f32.gmra.mrb[0].mxu0 %v282
  %v568 = vpop.f32.mrb[0].mxu0
  %v569 = vadd.f32 %v330, %v568
  %v570 = vpop.f32.mrb[0].mxu0
  %571 = vmatprep.mubr.f32.mxu0 0.0
  %572 = vmatmul.mubr.f32.gmra.mrb[0].mxu0 %v283
  %v573 = vpop.f32.mrb[0].mxu0
  %v574 = vadd.f32 %v331, %v573
  %v575 = vpop.f32.mrb[0].mxu0
  %576 = vmatprep.mubr.f32.mxu0 0.0
  %577 = vmatmul.mubr.f32.gmra.mrb[0].mxu0 %v284
  %v578 = vpop.f32.mrb[0].mxu0
  %v579 = vadd.f32 %v332, %v578
  %v580 = vpop.f32.mrb[0].mxu0
  %581 = vmatprep.mubr.f32.mxu0 0.0
  %582 = vmatmul.mubr.f32.gmra.mrb[0].mxu0 %v285
  %v583 = vpop.f32.mrb[0].mxu0
  %v584 = vadd.f32 %v333, %v583
  %v585 = vpop.f32.mrb[0].mxu0
  %586 = vmatprep.mubr.f32.mxu0 0.0
  %587 = vmatmul.mubr.f32.gmra.mrb[0].mxu0 %v286
  %v588 = vpop.f32.mrb[0].mxu0
  %v589 = vadd.f32 %v334, %v588
  %v590 = vpop.f32.mrb[0].mxu0
  %591 = vmatprep.mubr.f32.mxu0 0.0
  %592 = vmatmul.mubr.f32.gmra.mrb[0].mxu0 %v287
  %v593 = vpop.f32.mrb[0].mxu0
  %v594 = vadd.f32 %v335, %v593
  %v595 = vpop.f32.mrb[0].mxu0
  %596 = vmatprep.mubr.f32.mxu0 0.0
  %597 = vmatmul.mubr.f32.gmra.mrb[0].mxu0 %v288
  %v598 = vpop.f32.mrb[0].mxu0
  %v599 = vadd.f32 %v336, %v598
  %v600 = vpop.f32.mrb[0].mxu0
  %601 = vmatprep.mubr.f32.mxu0 0.0
  %602 = vmatmul.mubr.f32.gmra.mrb[0].mxu0 %v289
  %v603 = vpop.f32.mrb[0].mxu0
  %v604 = vadd.f32 %v337, %v603
  %v605 = vpop.f32.mrb[0].mxu0
  %606 = vmatprep.mubr.f32.mxu0 0.0
  %607 = vmatmul.mubr.f32.gmra.mrb[0].mxu0 %v290
  %v608 = vpop.f32.mrb[0].mxu0
  %v609 = vadd.f32 %v338, %v608
  %v610 = vpop.f32.mrb[0].mxu0
  %611 = vmatprep.mubr.f32.mxu0 0.0
  %612 = vmatmul.mubr.f32.gmra.mrb[0].mxu0 %v291
  %v613 = vpop.f32.mrb[0].mxu0
  %v614 = vadd.f32 %v339, %v613
  %v615 = vpop.f32.mrb[0].mxu0
  %616 = vmatprep.mubr.f32.mxu0 0.0
  %617 = vmatmul.mubr.f32.gmra.mrb[0].mxu0 %v292
  %v618 = vpop.f32.mrb[0].mxu0
  %v619 = vadd.f32 %v340, %v618
  %v620 = vpop.f32.mrb[0].mxu0
  %621 = vmatprep.mubr.f32.mxu0 0.0
  %622 = vmatmul.mubr.f32.gmra.mrb[0].mxu0 %v293
  %v623 = vpop.f32.mrb[0].mxu0
  %v624 = vadd.f32 %v341, %v623
  %v625 = vpop.f32.mrb[0].mxu0
  %626 = vmatprep.mubr.f32.mxu0 0.0
  %627 = vmatmul.mubr.f32.gmra.mrb[0].mxu0 %v294
  %v628 = vpop.f32.mrb[0].mxu0
  %v629 = vadd.f32 %v342, %v628
  %v630 = vpop.f32.mrb[0].mxu0
  %631 = vmatprep.mubr.f32.mxu0 0.0
  %632 = vmatmul.mubr.f32.gmra.mrb[0].mxu0 %v295
  %v633 = vpop.f32.mrb[0].mxu0
  %v634 = vadd.f32 %v343, %v633
  %v635 = vpop.f32.mrb[0].mxu0
  %636 = vmatprep.mubr.f32.mxu0 0.0
  %637 = vmatmul.mubr.f32.gmra.mrb[0].mxu0 %v296
  %v638 = vpop.f32.mrb[0].mxu0
  %v639 = vadd.f32 %v344, %v638
  %v640 = vpop.f32.mrb[0].mxu0
  %641 = vmatprep.mubr.f32.mxu0 0.0
  %642 = vmatmul.mubr.f32.gmra.mrb[0].mxu0 %v297
  %v643 = vpop.f32.mrb[0].mxu0
  %v644 = vadd.f32 %v345, %v643
  %v645 = vpop.f32.mrb[0].mxu0
  %646 = vmatprep.mubr.f32.mxu0 0.0
  %647 = vmatmul.mubr.f32.gmra.mrb[0].mxu0 %v298
  %v648 = vpop.f32.mrb[0].mxu0
  %v649 = vadd.f32 %v346, %v648
  %v650 = vpop.f32.mrb[0].mxu0
  %651 = vdwg.mxu0
  %v652 = vtanh.pop %v414
  %v653 = vtanh.pop %v419
  %v654 = vtanh.pop %v424
  %v655 = vtanh.pop %v429
  %v656 = vtanh.pop %v434
  %v657 = vtanh.pop %v439
  %v658 = vtanh.pop %v444
  %v659 = vtanh.pop %v449
  %v660 = vtanh.pop %v454
  %v661 = vtanh.pop %v459
  %v662 = vtanh.pop %v464
  %v663 = vtanh.pop %v469
  %v664 = vtanh.pop %v474
  %v665 = vtanh.pop %v479
  %v666 = vtanh.pop %v484
  %v667 = vtanh.pop %v489
  %v668 = vtanh.pop %v494
  %v669 = vtanh.pop %v499
  %v670 = vtanh.pop %v504
  %v671 = vtanh.pop %v509
  %v672 = vtanh.pop %v514
  %v673 = vtanh.pop %v519
  %v674 = vtanh.pop %v524
  %v675 = vtanh.pop %v529
  %v676 = vtanh.pop %v534
  %v677 = vtanh.pop %v539
  %v678 = vtanh.pop %v544
  %v679 = vtanh.pop %v549
  %v680 = vtanh.pop %v554
  %v681 = vtanh.pop %v559
  %v682 = vtanh.pop %v564
  %v683 = vtanh.pop %v569
  %v684 = vtanh.pop %v574
  %v685 = vtanh.pop %v579
  %v686 = vtanh.pop %v584
  %v687 = vtanh.pop %v589
  %v688 = vtanh.pop %v594
  %v689 = vtanh.pop %v599
  %v690 = vtanh.pop %v604
  %v691 = vtanh.pop %v609
  %v692 = vtanh.pop %v614
  %v693 = vtanh.pop %v619
  %v694 = vtanh.pop %v624
  %v695 = vtanh.pop %v629
  %v696 = vtanh.pop %v634
  %v697 = vtanh.pop %v639
  %v698 = vtanh.pop %v644
  %v699 = vtanh.pop %v649
  %v700 = vld [vmem:[%s4] sm:$0x7]
  %s701 = sld [smem:[#allocation2]]
  %v702 = vstv %s701
  %v704 = vlaneseq
  %v705 = vshrl.u32 %v704, 7
  %v706 = vsub.s32 0, %v705
  %v707 = vrot.slane %v700, %v706
  %v708 = vlaneseq
  %v709 = vshrl.u32 %v708, 7
  %v710 = vsub.s32 1, %v709
  %v711 = vrot.slane %v700, %v710
  %v712 = vlaneseq
  %v713 = vshrl.u32 %v712, 7
  %v714 = vsub.s32 2, %v713
  %v715 = vrot.slane %v700, %v714
  %719 = vmatprep.subr.mxu0 0.0
  %720 = vmatpush1.msra.mxu0 %v652
  %721 = vmatprep.subr.mxu0 0.0
  %722 = vmatpush1.msra.mxu0 %v653
  %723 = vmatprep.subr.mxu0 0.0
  %724 = vmatpush1.msra.mxu0 %v654
  %725 = vmatprep.subr.mxu0 0.0
  %726 = vmatpush1.msra.mxu0 %v655
  %727 = vmatprep.subr.mxu0 0.0
  %728 = vmatpush1.msra.mxu0 %v656
  %729 = vmatprep.subr.mxu0 0.0
  %730 = vmatpush1.msra.mxu0 %v657
  %731 = vmatprep.subr.mxu0 0.0
  %732 = vmatpush1.msra.mxu0 %v658
  %733 = vmatprep.subr.mxu0 0.0
  %734 = vmatpush1.msra.mxu0 %v659
  %735 = vmatprep.subr.mxu0 0.0
  %736 = vmatpush1.msra.mxu0 %v660
  %737 = vmatprep.subr.mxu0 0.0
  %738 = vmatpush1.msra.mxu0 %v661
  %739 = vmatprep.subr.mxu0 0.0
  %740 = vmatpush1.msra.mxu0 %v662
  %741 = vmatprep.subr.mxu0 0.0
  %742 = vmatpush1.msra.mxu0 %v663
  %743 = vmatprep.subr.mxu0 0.0
  %744 = vmatpush1.msra.mxu0 %v664
  %745 = vmatprep.subr.mxu0 0.0
  %746 = vmatpush1.msra.mxu0 %v665
  %747 = vmatprep.subr.mxu0 0.0
  %748 = vmatpush1.msra.mxu0 %v666
  %749 = vmatprep.subr.mxu0 0.0
  %750 = vmatpush1.msra.mxu0 %v667
  %751 = vmatprep.subr.mxu0 0.0
  %752 = vmatpush1.msra.mxu0 %v668
  %753 = vmatprep.subr.mxu0 0.0
  %754 = vmatpush1.msra.mxu0 %v669
  %755 = vmatprep.subr.mxu0 0.0
  %756 = vmatpush1.msra.mxu0 %v670
  %757 = vmatprep.subr.mxu0 0.0
  %758 = vmatpush1.msra.mxu0 %v671
  %759 = vmatprep.subr.mxu0 0.0
  %760 = vmatpush1.msra.mxu0 %v672
  %761 = vmatprep.subr.mxu0 0.0
  %762 = vmatpush1.msra.mxu0 %v673
  %763 = vmatprep.subr.mxu0 0.0
  %764 = vmatpush1.msra.mxu0 %v674
  %765 = vmatprep.subr.mxu0 0.0
  %766 = vmatpush1.msra.mxu0 %v675
  %767 = vmatprep.subr.mxu0 0.0
  %768 = vmatpush1.msra.mxu0 %v676
  %769 = vmatprep.subr.mxu0 0.0
  %770 = vmatpush1.msra.mxu0 %v677
  %771 = vmatprep.subr.mxu0 0.0
  %772 = vmatpush1.msra.mxu0 %v678
  %773 = vmatprep.subr.mxu0 0.0
  %774 = vmatpush1.msra.mxu0 %v679
  %775 = vmatprep.subr.mxu0 0.0
  %776 = vmatpush1.msra.mxu0 %v680
  %777 = vmatprep.subr.mxu0 0.0
  %778 = vmatpush1.msra.mxu0 %v681
  %779 = vmatprep.subr.mxu0 0.0
  %780 = vmatpush1.msra.mxu0 %v682
  %781 = vmatprep.subr.mxu0 0.0
  %782 = vmatpush1.msra.mxu0 %v683
  %783 = vmatprep.mubr.f32.mxu0 %v711
  %784 = vmatmul.mubr.f32.gmra.mrb[0].mxu0 %v707
  %v785 = vpop.f32.mrb[0].mxu0
  %v786 = vadd.f32 %v702, %v785
  %v787 = vpop.f32.mrb[0].mxu0
  %788 = vdwg.mxu0
  %789 = vmatprep.subr.mxu0 0.0
  %790 = vmatpush1.msra.mxu0 %v684
  %791 = vmatprep.subr.mxu0 0.0
  %792 = vmatpush1.msra.mxu0 %v685
  %793 = vmatprep.subr.mxu0 0.0
  %794 = vmatpush1.msra.mxu0 %v686
  %795 = vmatprep.subr.mxu0 0.0
  %796 = vmatpush1.msra.mxu0 %v687
  %797 = vmatprep.subr.mxu0 0.0
  %798 = vmatpush1.msra.mxu0 %v688
  %799 = vmatprep.subr.mxu0 0.0
  %800 = vmatpush1.msra.mxu0 %v689
  %801 = vmatprep.subr.mxu0 0.0
  %802 = vmatpush1.msra.mxu0 %v690
  %803 = vmatprep.subr.mxu0 0.0
  %804 = vmatpush1.msra.mxu0 %v691
  %805 = vmatprep.subr.mxu0 0.0
  %806 = vmatpush1.msra.mxu0 %v692
  %807 = vmatprep.subr.mxu0 0.0
  %808 = vmatpush1.msra.mxu0 %v693
  %809 = vmatprep.subr.mxu0 0.0
  %810 = vmatpush1.msra.mxu0 %v694
  %811 = vmatprep.subr.mxu0 0.0
  %812 = vmatpush1.msra.mxu0 %v695
  %813 = vmatprep.subr.mxu0 0.0
  %814 = vmatpush1.msra.mxu0 %v696
  %815 = vmatprep.subr.mxu0 0.0
  %816 = vmatpush1.msra.mxu0 %v697
  %817 = vmatprep.subr.mxu0 0.0
  %818 = vmatpush1.msra.mxu0 %v698
  %819 = vmatprep.subr.mxu0 0.0
  %820 = vmatpush1.msra.mxu0 %v699
  %821 = vmatprep.subr.mxu0 0.0
  %822 = vmatpush1.msra.mxu0 0.0
  %823 = vmatprep.subr.mxu0 0.0
  %824 = vmatpush1.msra.mxu0 0.0
  %825 = vmatprep.subr.mxu0 0.0
  %826 = vmatpush1.msra.mxu0 0.0
  %827 = vmatprep.subr.mxu0 0.0
  %828 = vmatpush1.msra.mxu0 0.0
  %829 = vmatprep.subr.mxu0 0.0
  %830 = vmatpush1.msra.mxu0 0.0
  %831 = vmatprep.subr.mxu0 0.0
  %832 = vmatpush1.msra.mxu0 0.0
  %833 = vmatprep.subr.mxu0 0.0
  %834 = vmatpush1.msra.mxu0 0.0
  %835 = vmatprep.subr.mxu0 0.0
  %836 = vmatpush1.msra.mxu0 0.0
  %837 = vmatprep.subr.mxu0 0.0
  %838 = vmatpush1.msra.mxu0 0.0
  %839 = vmatprep.subr.mxu0 0.0
  %840 = vmatpush1.msra.mxu0 0.0
  %841 = vmatprep.subr.mxu0 0.0
  %842 = vmatpush1.msra.mxu0 0.0
  %843 = vmatprep.subr.mxu0 0.0
  %844 = vmatpush1.msra.mxu0 0.0
  %845 = vmatprep.subr.mxu0 0.0
  %846 = vmatpush1.msra.mxu0 0.0
  %847 = vmatprep.subr.mxu0 0.0
  %848 = vmatpush1.msra.mxu0 0.0
  %849 = vmatprep.subr.mxu0 0.0
  %850 = vmatpush1.msra.mxu0 0.0
  %851 = vmatprep.subr.mxu0 0.0
  %852 = vmatpush1.msra.mxu0 0.0
  %853 = vmatprep.mubr.f32.mxu0 0.0
  %854 = vmatmul.mubr.f32.gmra.mrb[0].mxu0 %v715
  %v855 = vpop.f32.mrb[0].mxu0
  %v856 = vadd.f32 %v786, %v855
  %v857 = vpop.f32.mrb[0].mxu0
  %858 = vdwg.mxu0
  %859 = vst [vmem:[%s6] sm:$0x1] %v856
  // Predicated region
  $region26: #{simple_forward.1} parent=0 // pred_check
    _
  $region27: #{simple_forward.1} parent=0 // pred_check_branch
    %861 = sbr.rel (0) target = $region29
  $region28: #{simple_forward.1} parent=0 // pred_region
    _
  $region29: #{simple_forward.1} parent=0 // pred_fallthru
    _
  // Predicated region
  $region30: #{simple_forward.1} parent=0 // pred_check
    _
  $region31: #{simple_forward.1} parent=0 // pred_check_branch
    %863 = sbr.rel (0) target = $region33
  $region32: #{simple_forward.1} parent=0 // pred_region
    _
  $region33: #{simple_forward.1} parent=0 // pred_fallthru
    _

</llo_original>
